<compile_context>
chip_gen: v7x
topology: tpu7x:2x2x1
jax: 0.10.0
libtpu: 0.0.40
codegen_flags: <defaults>
</compile_context>

<pallas_src>
import math

import numpy as np
import jax
import jax.numpy as jnp
from jax.experimental import pallas as pl
from jax.experimental.pallas import tpu as pltpu


# -----------------------------------------------------------------------------
# Pallas kernel
# -----------------------------------------------------------------------------
def _sinusoids_kernel(x_ref, freq_ref, out_ref):
    # x_ref:    (1, TE)     squared distances, lane-dense along E
    # freq_ref: (F, 1)      one frequency per sublane row
    # out_ref:  (2, F, TE)  slab 0 = sin, slab 1 = cos
    s = jnp.sqrt(x_ref[...] + 1e-8)          # (1, TE)  VPU
    emb = freq_ref[...] * s                  # (F, TE)  lane/sublane broadcast
    out_ref[0, :, :] = jnp.sin(emb)          # EUP
    out_ref[1, :, :] = jnp.cos(emb)          # EUP


# -----------------------------------------------------------------------------
# Wrapper
# -----------------------------------------------------------------------------
def sinusoids_embedding(x, frequencies, *, tile_e=512):
    """x: (E, 1) float; frequencies: (F,) float32. Returns (E, 2F) float32."""
    E = x.shape[0]
    F = int(frequencies.shape[0])

    e_pad = ((E + tile_e - 1) // tile_e) * tile_e
    xt = x.astype(jnp.float32).reshape(1, E)           # lane-dense
    if e_pad != E:
        xt = jnp.pad(xt, ((0, 0), (0, e_pad - E)))     # zero pad: sqrt(1e-8), harmless
    freq_col = frequencies.astype(jnp.float32).reshape(F, 1)

    out3 = pl.pallas_call(
        _sinusoids_kernel,
        out_shape=jax.ShapeDtypeStruct((2, F, e_pad), jnp.float32),
        grid_spec=pltpu.PrefetchScalarGridSpec(
            num_scalar_prefetch=0,
            grid=(e_pad // tile_e,),
            in_specs=[
                pl.BlockSpec((1, tile_e), lambda i: (0, i)),   # x tile
                pl.BlockSpec((F, 1), lambda i: (0, 0)),        # frequencies (resident)
            ],
            out_specs=pl.BlockSpec((2, F, tile_e), lambda i: (0, 0, i)),
        ),
        compiler_params=pltpu.CompilerParams(
            dimension_semantics=("parallel",)),
    )(xt, freq_col)

    # Back to the module's (E, 2F) layout: per row -> [sin_0..sin_{F-1}, cos_0..cos_{F-1}].
    emb = jnp.transpose(out3[:, :, :E], (2, 0, 1)).reshape(E, 2 * F)
    return emb


# -----------------------------------------------------------------------------
# Module constants (mirror SinusoidsEmbeddingNew.__init__)
# -----------------------------------------------------------------------------
def make_frequencies(max_res=15.0, min_res=15.0 / 2000.0, div_factor=4):
    n_frequencies = int(math.log(max_res / min_res, div_factor)) + 1
    freqs = 2.0 * math.pi * (float(div_factor) ** np.arange(n_frequencies)) / max_res
    return jnp.asarray(freqs, jnp.float32)              # (F,), F = 6 -> dim = 12


# -----------------------------------------------------------------------------
# Pure-JAX reference (mirrors the PyTorch forward) for correctness checking
# -----------------------------------------------------------------------------
def reference(x, frequencies):
    s = jnp.sqrt(x.astype(jnp.float32) + 1e-8)           # (E, 1)
    emb = s * frequencies[None, :]                       # (E, F)
    return jnp.concatenate([jnp.sin(emb), jnp.cos(emb)], axis=-1)


if __name__ == "__main__":
    key = jax.random.PRNGKey(0)
    E = 600                                              # number of edges/distances
    freqs = make_frequencies()                           # (6,), embedding dim = 12

    # squared pairwise distances are non-negative
    x = jax.random.uniform(key, (E, 1), jnp.float32, 0.0, 4.0)

    out = sinusoids_embedding(x, freqs)
    out = jax.block_until_ready(out)

    ref = reference(x, freqs)
    if out.shape != (E, 2 * freqs.shape[0]):
        raise AssertionError(f"bad output shape {out.shape}")
    if not np.allclose(np.asarray(out), np.asarray(ref), atol=5e-4, rtol=5e-4):
        raise AssertionError("Pallas kernel does not match reference")

    print("KERNEL_OK")
</pallas_src>

<mosaic_0001>
module attributes {stable_mosaic.version = 11 : i64} {
  func.func @_sinusoids_kernel(%arg0: i32, %arg1: memref<1x512xf32, #tpu.memory_space<vmem>>, %arg2: memref<6x1xf32, #tpu.memory_space<vmem>>, %arg3: memref<2x6x512xf32, #tpu.memory_space<vmem>>) attributes {dimension_semantics = [#tpu.dimension_semantics<parallel>], iteration_bounds = array<i64: 2>, scalar_prefetch = 0 : i64, scratch_operands = 0 : i64, tpu.core_type = #tpu.core_type<tc>, window_params = [{transform_indices = @transform_0, window_bounds = array<i64: 1, 512>}, {pipeline_mode = #tpu.pipeline_mode<synchronous>, transform_indices = @transform_1, window_bounds = array<i64: 6, 1>}, {transform_indices = @transform_2, window_bounds = array<i64: 2, 6, 512>}]} {
    %c0 = arith.constant 0 : index
    %c0_0 = arith.constant 0 : index
    %0 = vector.load %arg1[%c0, %c0_0] : memref<1x512xf32, #tpu.memory_space<vmem>>, vector<1x512xf32>
    %cst = arith.constant 9.99999993E-9 : f32
    %1 = vector.broadcast %cst : f32 to vector<1x512xf32>
    %2 = arith.addf %0, %1 : vector<1x512xf32>
    %3 = math.sqrt %2 : vector<1x512xf32>
    %c0_1 = arith.constant 0 : index
    %c0_2 = arith.constant 0 : index
    %4 = vector.load %arg2[%c0_1, %c0_2] : memref<6x1xf32, #tpu.memory_space<vmem>>, vector<6x1xf32>
    %5 = vector.broadcast %4 : vector<6x1xf32> to vector<6x512xf32>
    %6 = vector.broadcast %3 : vector<1x512xf32> to vector<6x512xf32>
    %7 = arith.mulf %5, %6 : vector<6x512xf32>
    %8 = math.sin %7 : vector<6x512xf32>
    %c0_3 = arith.constant 0 : index
    %c0_4 = arith.constant 0 : index
    %c0_5 = arith.constant 0 : index
    %9 = vector.load %arg3[%c0_3, %c0_4, %c0_5] : memref<2x6x512xf32, #tpu.memory_space<vmem>>, vector<1x6x512xf32>
    %10 = vector.shape_cast %9 : vector<1x6x512xf32> to vector<6x512xf32>
    %11 = vector.shape_cast %8 : vector<6x512xf32> to vector<1x6x512xf32>
    tpu.vector_store %arg3[%c0_3, %c0_4, %c0_5], %11 {strides = array<i32>} : memref<2x6x512xf32, #tpu.memory_space<vmem>>, vector<1x6x512xf32>,
    %12 = math.cos %7 : vector<6x512xf32>
    %c1 = arith.constant 1 : index
    %c0_6 = arith.constant 0 : index
    %c0_7 = arith.constant 0 : index
    %13 = vector.load %arg3[%c1, %c0_6, %c0_7] : memref<2x6x512xf32, #tpu.memory_space<vmem>>, vector<1x6x512xf32>
    %14 = vector.shape_cast %13 : vector<1x6x512xf32> to vector<6x512xf32>
    %15 = vector.shape_cast %12 : vector<6x512xf32> to vector<1x6x512xf32>
    tpu.vector_store %arg3[%c1, %c0_6, %c0_7], %15 {strides = array<i32>} : memref<2x6x512xf32, #tpu.memory_space<vmem>>, vector<1x6x512xf32>,
    return
  }
  func.func @transform_0(%arg0: i32) -> (i32, i32) {
    %c0_i32 = arith.constant 0 : i32
    %c0_i32_0 = arith.constant 0 : i32
    return %c0_i32, %arg0 : i32, i32
  }
  func.func @transform_1(%arg0: i32) -> (i32, i32) {
    %c0_i32 = arith.constant 0 : i32
    %c0_i32_0 = arith.constant 0 : i32
    %c0_i32_1 = arith.constant 0 : i32
    return %c0_i32, %c0_i32_0 : i32, i32
  }
  func.func @transform_2(%arg0: i32) -> (i32, i32, i32) {
    %c0_i32 = arith.constant 0 : i32
    %c0_i32_0 = arith.constant 0 : i32
    %c0_i32_1 = arith.constant 0 : i32
    return %c0_i32, %c0_i32_0, %arg0 : i32, i32, i32
  }
}

</mosaic_0001>

<llo_original>
// kernel: tpu_custom_call.1
$region0: #{tpu_custom_call.1}
  #allocation0 [shape = 'u32[]', space=smem, size = 0x4, offset = 0x4, fixed_abs, tag = 'smem constant byte address 0x4 - core index']
  #allocation1 [shape = 'u32[144,128]{1,0:T(1,128)}', space=vmem, size = 0x12000, scoped, tag = 'internal scratch']
  %s0 = inlined_call_operand.vmem [shape: f32[1,1024], index: 0, kind: input, shape index: {}]
  %s1 = inlined_call_operand.vmem [shape: f32[6,1], index: 1, kind: input, shape index: {}]
  %s2 = inlined_call_operand.vmem [shape: f32[2,6,1024], index: 2, kind: output, shape index: {}]
  %s3 = sld [smem:[#allocation0]]
  $region60: #{tpu_custom_call.1} parent=0
    _
  %s5 = ssub.s32 1, %s3
  %s6 = scalar_select 0, %s5, %s3
  $region1: #{tpu_custom_call.1} parent=0
    #allocation2 [shape = 'u8[65536]{0}', space=vmem, size = 0x10000, scoped, tag = 'output window, operand 0']
    loop: start=0, step=1, limit=4
    $region2: #{tpu_custom_call.1} parent=1 // loop_pre_header
      _
    $region3: #{tpu_custom_call.1} parent=1 // loop_header
      %s8 = sphi 0, %s12
      %p9 = scmp.ge.s32.totalorder %s8, 4
      %s18 = sphi 0, %s20
      %s21 = sphi 0, %s18
      %s22 = sphi 0, %s21
      %s38 = sphi 0, %s22
      %s42 = sphi 0, %s42
      %s44 = sphi 0, %s42
      %s45 = sphi 0, %s44
      %s59 = sphi 0, %s45
      %s65 = sphi 0, %s67
      %s68 = sphi 0, %s65
      %s69 = sphi 0, %s68
      %s85 = sphi 0, %s69
    $region4: #{tpu_custom_call.1} parent=1 // loop_header_branch
      %11 = sbr.rel (%p9) target = $region8
    $region5: #{tpu_custom_call.1} parent=1 // loop_body
      %s13 = ssub.s32 %s8, 1
      %s14 = ssub.s32 %s8, 2
      %s15 = sadd.s32 %s8, 1
      %s16 = ssub.s32 %s8, %s15
      %p17 = scmp.eq.s32.totalorder %s16, 0
      %s19 = sadd.s32 %s18, 1
      %s20 = scalar_select %p17, %s18, %s19
      %p23 = pneg %p17
      %p24 = scmp.eq.s32.totalorder %s8, 1
      %p25 = por %p23, %p24
      %p26 = scmp.ne.s32.totalorder %s18, %s21
      %p27 = scmp.eq.s32.totalorder %s8, 0
      %p28 = por %p26, %p27
      %p29 = scmp.ne.s32.totalorder %s18, %s21
      %p30 = scmp.eq.s32.totalorder %s13, 1
      %p31 = por %p29, %p30
      %p32 = scmp.ne.s32.totalorder %s21, %s22
      %p33 = scmp.eq.s32.totalorder %s13, 0
      %p34 = por %p32, %p33
      %p35 = scmp.ne.s32.totalorder %s21, %s22
      %p36 = scmp.eq.s32.totalorder %s14, 1
      %p37 = por %p35, %p36
      %p39 = scmp.ne.s32.totalorder %s22, %s38
      %p40 = scmp.eq.s32.totalorder %s14, 0
      %p41 = por %p39, %p40
      %s43 = sadd.s32 %s42, 1
      %p46 = scmp.eq.s32.totalorder %s8, 1
      %p47 = scmp.ne.s32.totalorder %s42, %s44
      %p48 = scmp.eq.s32.totalorder %s8, 0
      %p49 = por %p47, %p48
      %p50 = scmp.ne.s32.totalorder %s42, %s44
      %p51 = scmp.eq.s32.totalorder %s13, 1
      %p52 = por %p50, %p51
      %p53 = scmp.ne.s32.totalorder %s44, %s45
      %p54 = scmp.eq.s32.totalorder %s13, 0
      %p55 = por %p53, %p54
      %p56 = scmp.ne.s32.totalorder %s44, %s45
      %p57 = scmp.eq.s32.totalorder %s14, 1
      %p58 = por %p56, %p57
      %p60 = scmp.ne.s32.totalorder %s45, %s59
      %p61 = scmp.eq.s32.totalorder %s14, 0
      %p62 = por %p60, %p61
      %s63 = ssub.s32 %s8, %s15
      %p64 = scmp.eq.s32.totalorder %s63, 0
      %s66 = sadd.s32 %s65, 1
      %s67 = scalar_select %p64, %s65, %s66
      %p70 = pneg %p64
      %p71 = scmp.eq.s32.totalorder %s8, 1
      %p72 = por %p70, %p71
      %p73 = scmp.ne.s32.totalorder %s65, %s68
      %p74 = scmp.eq.s32.totalorder %s8, 0
      %p75 = por %p73, %p74
      %p76 = scmp.ne.s32.totalorder %s65, %s68
      %p77 = scmp.eq.s32.totalorder %s13, 1
      %p78 = por %p76, %p77
      %p79 = scmp.ne.s32.totalorder %s68, %s69
      %p80 = scmp.eq.s32.totalorder %s13, 0
      %p81 = por %p79, %p80
      %p82 = scmp.ne.s32.totalorder %s68, %s69
      %p83 = scmp.eq.s32.totalorder %s14, 1
      %p84 = por %p82, %p83
      %p86 = scmp.ne.s32.totalorder %s69, %s85
      %p87 = scmp.eq.s32.totalorder %s14, 0
      %p88 = por %p86, %p87
      %p89 = scmp.le.s32.totalorder 1, %s8
      %p90 = scmp.lt.s32.totalorder %s8, 3
      %p91 = pnand %p89, %p90
      %p92 = pneg %p91
      // Predicated region
      $region9: #{tpu_custom_call.1} parent=5 // pred_check
        _
      $region10: #{tpu_custom_call.1} parent=5 // pred_check_branch
        %94 = sbr.rel (%p91) target = $region12
      $region11: #{tpu_custom_call.1} parent=5 // pred_region
        %s95 = ssub.s32 %s8, 1
        // Predicated region
        $region13: #{tpu_custom_call.1} parent=11 // pred_check
          %p96 = pneg %p55
        $region14: #{tpu_custom_call.1} parent=11 // pred_check_branch
          %98 = sbr.rel (%p96) target = $region16
        $region15: #{tpu_custom_call.1} parent=11 // pred_region
          _
        $region16: #{tpu_custom_call.1} parent=11 // pred_fallthru
          _
      $region12: #{tpu_custom_call.1} parent=5 // pred_fallthru
        _
      %p99 = scmp.lt.s32.totalorder %s8, 2
      // Predicated region
      $region17: #{tpu_custom_call.1} parent=5 // pred_check
        %p100 = pneg %p99
      $region18: #{tpu_custom_call.1} parent=5 // pred_check_branch
        %102 = sbr.rel (%p100) target = $region20
      $region19: #{tpu_custom_call.1} parent=5 // pred_region
        // Predicated region
        $region21: #{tpu_custom_call.1} parent=19 // pred_check
          %p103 = pneg %p28
        $region22: #{tpu_custom_call.1} parent=19 // pred_check_branch
          %105 = sbr.rel (%p103) target = $region24
        $region23: #{tpu_custom_call.1} parent=19 // pred_region
          %s106 = smul.u32 4, %s8
          %p107 = scmp.lt.s32.totalorder %s106, 7
          %s108 = scalar_select %p107, %s106, 7
          %s109 = scalar_lea.vmem %s0, %s108
          %s110 = smul.u32 4, %s8
        $region24: #{tpu_custom_call.1} parent=19 // pred_fallthru
          _
      $region20: #{tpu_custom_call.1} parent=5 // pred_fallthru
        _
      %p111 = scmp.le.s32.totalorder 1, %s8
      %p112 = scmp.lt.s32.totalorder %s8, 3
      %p113 = pnand %p111, %p112
      %p114 = pneg %p113
      // Predicated region
      $region25: #{tpu_custom_call.1} parent=5 // pred_check
        _
      $region26: #{tpu_custom_call.1} parent=5 // pred_check_branch
        %116 = sbr.rel (%p113) target = $region28
      $region27: #{tpu_custom_call.1} parent=5 // pred_region
        %s117 = ssub.s32 %s8, 1
        %s118 = smul.u32 4, %s13
        %p119 = scmp.lt.s32.totalorder %s118, 7
        %s120 = scalar_select %p119, %s118, 7
        %s121 = scalar_lea.vmem %s0, %s120
        %p122 = pneg %p34
        %p123 = pneg %p31
        %p124 = pneg %p55
        %p125 = pneg %p52
        %p126 = pneg %p81
        %p127 = pneg %p78
        %s128 = sand.u32 %s68, 1
        %s129 = sand.u32 %s68, 1
        %s130 = smul.addr %s129, 64
        %s131 = scalar_lea.vmem [#allocation2], %s130
        %s132 = smul.u32 4, %s13
        %p133 = scmp.lt.s32.totalorder %s132, 7
        %s134 = scalar_select %p133, %s132, 7
        %s135 = scalar_lea.vmem %s0, %s134
        %s136 = smul.u32 4, %s13
        %s137 = smul.u32 4, %s13
        %v138 = vld [vmem:[%s135] sm:$0xf]
        %v139 = vadd.f32 %v138, 1e-08
        %v140 = vrsqrt.pop %v139
        %v141 = vmul.f32 %v139, %v140
        %vm142 = vcmp.eq.f32.partialorder %v139, inf
        %v143 = vsel %vm142, %v139, %v141
        %vm144 = vcmp.eq.f32.partialorder %v139, 0.0
        %v145 = vand.u32 %v139, 2147483648
        %v146 = vsel %vm144, %v145, %v143
        %v147 = vld [vmem:[%s1] sm:$0x3f]
        %149 = vset.pattern.permute.xlu0 0
        %150 = vperm.xlu0 %149, %v147
        %v151 = vpop.permute.xlu0 %150
        %v154 = vlaneseq
        %v155 = vshrl.u32 %v154, 7
        %v156 = vsub.s32 0, %v155
        %v157 = vrot.slane %v146, %v156
        %v158 = vlaneseq
        %v159 = vshrl.u32 %v158, 7
        %v160 = vsub.s32 1, %v159
        %v161 = vrot.slane %v146, %v160
        %v162 = vlaneseq
        %v163 = vshrl.u32 %v162, 7
        %v164 = vsub.s32 2, %v163
        %v165 = vrot.slane %v146, %v164
        %v166 = vlaneseq
        %v167 = vshrl.u32 %v166, 7
        %v168 = vsub.s32 3, %v167
        %v169 = vrot.slane %v146, %v168
        %v174 = vmul.f32 %v151, %v157
        %v175 = vmul.f32 %v151, %v161
        %v176 = vmul.f32 %v151, %v165
        %v177 = vmul.f32 %v151, %v169
        %v178 = vand.u32 2147483647, %v174
        %vm179 = vcmp.le.f32.partialorder %v178, 0.7853982
        %vm180 = vcmp.lt.s32.totalorder %v174, 0
        %v181 = vand.u32 %v174, 2139095040
        %v182 = vshrl.u32 %v181, 23
        %v183 = vsub.s32 %v182, 127
        %v184 = vand.u32 2147483647, %v174
        %v185 = vand.u32 %v184, 8388607
        %v186 = vor.u32 %v185, 8388608
        %v187 = vsub.s32 0, %v186
        %v188 = vadd.s32 %v183, 1
        %vm189 = vcmp.gt.s32.totalorder %v188, 0
        %v190 = vsel %vm189, %v188, 0
        %v191 = vshrl.u32 %v190, 5
        %v192 = vand.u32 %v190, 31
        %v193 = vsub.s32 32, %v192
        %v194 = vshrl.u32 683565275, %v193
        %v195 = vshll.u32 683565275, %v192
        %v196 = vshrl.u32 2475754826, %v193
        %v197 = vor.u32 %v195, %v196
        %v198 = vshll.u32 2475754826, %v192
        %v199 = vshrl.u32 2131351028, %v193
        %v200 = vor.u32 %v198, %v199
        %v201 = vshll.u32 2131351028, %v192
        %v202 = vshrl.u32 2102212464, %v193
        %v203 = vor.u32 %v201, %v202
        %v204 = vshll.u32 2102212464, %v192
        %v205 = vshrl.u32 920167782, %v193
        %v206 = vor.u32 %v204, %v205
        %v207 = vshll.u32 920167782, %v192
        %v208 = vshrl.u32 1326507024, %v193
        %v209 = vor.u32 %v207, %v208
        %vm210 = vcmp.lt.s32.totalorder %v191, 1
        %vm211 = vcmp.lt.s32.totalorder %v191, 2
        %vm212 = vcmp.lt.s32.totalorder %v191, 3
        %vm213 = vcmp.lt.s32.totalorder %v191, 4
        %v214 = vsel %vm210, %v194, %v197
        %v215 = vsel %vm213, %v203, 2102212464
        %v216 = vsel %vm212, %v200, %v215
        %v217 = vsel %vm211, %v214, %v216
        %v218 = vsel %vm210, %v197, %v200
        %v219 = vsel %vm213, %v206, 920167782
        %v220 = vsel %vm212, %v203, %v219
        %v221 = vsel %vm211, %v218, %v220
        %v222 = vsel %vm210, %v200, %v203
        %v223 = vsel %vm213, %v209, 1326507024
        %v224 = vsel %vm212, %v206, %v223
        %v225 = vsel %vm211, %v222, %v224
        %v226 = vshll.u32 %v186, 8
        %v227 = vmul.u32.u64.compose %v226, %v225
        %v228 = vextract.low.u32 %v227
        %v229 = vextract.high.u32 %v227
        %v230 = vmul.u32.u64.compose %v226, %v221
        %v231 = vextract.low.u32 %v230
        %v232 = vextract.high.u32 %v230
        %v233 = vmul.u32 %v226, %v217
        %v234 = vadd.s32 %v229, %v231
        %vm235 = vc.u32 %v229, %v231
        %v236 = vadd.s32 %v232, 1
        %v237 = vsel %vm235, %v236, %v232
        %v238 = vadd.s32 %v233, %v237
        %v239 = vadd.s32 %v238, 536870912
        %v240 = vshrl.u32 %v239, 30
        %v241 = vshll.u32 %v240, 30
        %v242 = vsub.s32 %v238, %v241
        %vm243 = vcmp.lt.s32.totalorder %v242, 0
        %v244 = vsub.s32 0, %v242
        %v245 = vsel %vm243, %v244, %v242
        %v246 = vclz %v245
        %v247 = vsub.s32 %v246, 2
        %vm248 = vcmp.gt.s32.totalorder 0, %v247
        %v249 = vsel %vm248, 0, %v247
        %v250 = vsub.s32 32, %v249
        %v251 = vshll.u32 %v242, %v249
        %v252 = vshrl.u32 %v234, %v250
        %v253 = vor.u32 %v251, %v252
        %v254 = vsub.s32 4294967266, %v249
        %v255 = vadd.s32 %v254, 127
        %v256 = vshll.u32 %v255, 23
        %v257 = vor.u32 4788187, %v256
        %v258 = vand.u32 2147483647, %v257
        %v260 = vcvt.s32.f32 %v253
        %v261 = vmul.f32 %v260, %v258
        %v262 = vxor.u32 %v261, 2147483648
        %v263 = vsel %vm180, %v262, %v261
        %v264 = vsub.s32 4, %v240
        %v265 = vsel %vm180, %v264, %v240
        %v266 = vsel %vm179, %v174, %v263
        %v267 = vsel %vm179, 0, %v265
        %v268 = vcosq.f32.pop %v266
        %v269 = vsinq.f32.pop %v266
        %vm270 = vweird.f32 %v174
        %v271 = vadd.s32 %v267, 3
        %v272 = vand.u32 %v271, 3
        %vm273 = vcmp.lt.s32.totalorder %v272, 2
        %vm274 = vcmp.eq.s32.totalorder %v272, 0
        %v275 = vxor.u32 %v269, 2147483648
        %v276 = vsel %vm274, %v268, %v275
        %vm277 = vcmp.eq.s32.totalorder %v272, 2
        %v278 = vxor.u32 %v268, 2147483648
        %v279 = vsel %vm277, %v278, %v269
        %v280 = vsel %vm273, %v276, %v279
        %v281 = vsel %vm270, nan, %v280
        %v282 = vand.u32 2147483647, %v175
        %vm283 = vcmp.le.f32.partialorder %v282, 0.7853982
        %vm284 = vcmp.lt.s32.totalorder %v175, 0
        %v285 = vand.u32 %v175, 2139095040
        %v286 = vshrl.u32 %v285, 23
        %v287 = vsub.s32 %v286, 127
        %v288 = vand.u32 2147483647, %v175
        %v289 = vand.u32 %v288, 8388607
        %v290 = vor.u32 %v289, 8388608
        %v291 = vsub.s32 0, %v290
        %v292 = vadd.s32 %v287, 1
        %vm293 = vcmp.gt.s32.totalorder %v292, 0
        %v294 = vsel %vm293, %v292, 0
        %v295 = vshrl.u32 %v294, 5
        %v296 = vand.u32 %v294, 31
        %v297 = vsub.s32 32, %v296
        %v298 = vshrl.u32 683565275, %v297
        %v299 = vshll.u32 683565275, %v296
        %v300 = vshrl.u32 2475754826, %v297
        %v301 = vor.u32 %v299, %v300
        %v302 = vshll.u32 2475754826, %v296
        %v303 = vshrl.u32 2131351028, %v297
        %v304 = vor.u32 %v302, %v303
        %v305 = vshll.u32 2131351028, %v296
        %v306 = vshrl.u32 2102212464, %v297
        %v307 = vor.u32 %v305, %v306
        %v308 = vshll.u32 2102212464, %v296
        %v309 = vshrl.u32 920167782, %v297
        %v310 = vor.u32 %v308, %v309
        %v311 = vshll.u32 920167782, %v296
        %v312 = vshrl.u32 1326507024, %v297
        %v313 = vor.u32 %v311, %v312
        %vm314 = vcmp.lt.s32.totalorder %v295, 1
        %vm315 = vcmp.lt.s32.totalorder %v295, 2
        %vm316 = vcmp.lt.s32.totalorder %v295, 3
        %vm317 = vcmp.lt.s32.totalorder %v295, 4
        %v318 = vsel %vm314, %v298, %v301
        %v319 = vsel %vm317, %v307, 2102212464
        %v320 = vsel %vm316, %v304, %v319
        %v321 = vsel %vm315, %v318, %v320
        %v322 = vsel %vm314, %v301, %v304
        %v323 = vsel %vm317, %v310, 920167782
        %v324 = vsel %vm316, %v307, %v323
        %v325 = vsel %vm315, %v322, %v324
        %v326 = vsel %vm314, %v304, %v307
        %v327 = vsel %vm317, %v313, 1326507024
        %v328 = vsel %vm316, %v310, %v327
        %v329 = vsel %vm315, %v326, %v328
        %v330 = vshll.u32 %v290, 8
        %v331 = vmul.u32.u64.compose %v330, %v329
        %v332 = vextract.low.u32 %v331
        %v333 = vextract.high.u32 %v331
        %v334 = vmul.u32.u64.compose %v330, %v325
        %v335 = vextract.low.u32 %v334
        %v336 = vextract.high.u32 %v334
        %v337 = vmul.u32 %v330, %v321
        %v338 = vadd.s32 %v333, %v335
        %vm339 = vc.u32 %v333, %v335
        %v340 = vadd.s32 %v336, 1
        %v341 = vsel %vm339, %v340, %v336
        %v342 = vadd.s32 %v337, %v341
        %v343 = vadd.s32 %v342, 536870912
        %v344 = vshrl.u32 %v343, 30
        %v345 = vshll.u32 %v344, 30
        %v346 = vsub.s32 %v342, %v345
        %vm347 = vcmp.lt.s32.totalorder %v346, 0
        %v348 = vsub.s32 0, %v346
        %v349 = vsel %vm347, %v348, %v346
        %v350 = vclz %v349
        %v351 = vsub.s32 %v350, 2
        %vm352 = vcmp.gt.s32.totalorder 0, %v351
        %v353 = vsel %vm352, 0, %v351
        %v354 = vsub.s32 32, %v353
        %v355 = vshll.u32 %v346, %v353
        %v356 = vshrl.u32 %v338, %v354
        %v357 = vor.u32 %v355, %v356
        %v358 = vsub.s32 4294967266, %v353
        %v359 = vadd.s32 %v358, 127
        %v360 = vshll.u32 %v359, 23
        %v361 = vor.u32 4788187, %v360
        %v362 = vand.u32 2147483647, %v361
        %v364 = vcvt.s32.f32 %v357
        %v365 = vmul.f32 %v364, %v362
        %v366 = vxor.u32 %v365, 2147483648
        %v367 = vsel %vm284, %v366, %v365
        %v368 = vsub.s32 4, %v344
        %v369 = vsel %vm284, %v368, %v344
        %v370 = vsel %vm283, %v175, %v367
        %v371 = vsel %vm283, 0, %v369
        %v372 = vcosq.f32.pop %v370
        %v373 = vsinq.f32.pop %v370
        %vm374 = vweird.f32 %v175
        %v375 = vadd.s32 %v371, 3
        %v376 = vand.u32 %v375, 3
        %vm377 = vcmp.lt.s32.totalorder %v376, 2
        %vm378 = vcmp.eq.s32.totalorder %v376, 0
        %v379 = vxor.u32 %v373, 2147483648
        %v380 = vsel %vm378, %v372, %v379
        %vm381 = vcmp.eq.s32.totalorder %v376, 2
        %v382 = vxor.u32 %v372, 2147483648
        %v383 = vsel %vm381, %v382, %v373
        %v384 = vsel %vm377, %v380, %v383
        %v385 = vsel %vm374, nan, %v384
        %v386 = vand.u32 2147483647, %v176
        %vm387 = vcmp.le.f32.partialorder %v386, 0.7853982
        %vm388 = vcmp.lt.s32.totalorder %v176, 0
        %v389 = vand.u32 %v176, 2139095040
        %v390 = vshrl.u32 %v389, 23
        %v391 = vsub.s32 %v390, 127
        %v392 = vand.u32 2147483647, %v176
        %v393 = vand.u32 %v392, 8388607
        %v394 = vor.u32 %v393, 8388608
        %v395 = vsub.s32 0, %v394
        %v396 = vadd.s32 %v391, 1
        %vm397 = vcmp.gt.s32.totalorder %v396, 0
        %v398 = vsel %vm397, %v396, 0
        %v399 = vshrl.u32 %v398, 5
        %v400 = vand.u32 %v398, 31
        %v401 = vsub.s32 32, %v400
        %v402 = vshrl.u32 683565275, %v401
        %v403 = vshll.u32 683565275, %v400
        %v404 = vshrl.u32 2475754826, %v401
        %v405 = vor.u32 %v403, %v404
        %v406 = vshll.u32 2475754826, %v400
        %v407 = vshrl.u32 2131351028, %v401
        %v408 = vor.u32 %v406, %v407
        %v409 = vshll.u32 2131351028, %v400
        %v410 = vshrl.u32 2102212464, %v401
        %v411 = vor.u32 %v409, %v410
        %v412 = vshll.u32 2102212464, %v400
        %v413 = vshrl.u32 920167782, %v401
        %v414 = vor.u32 %v412, %v413
        %v415 = vshll.u32 920167782, %v400
        %v416 = vshrl.u32 1326507024, %v401
        %v417 = vor.u32 %v415, %v416
        %vm418 = vcmp.lt.s32.totalorder %v399, 1
        %vm419 = vcmp.lt.s32.totalorder %v399, 2
        %vm420 = vcmp.lt.s32.totalorder %v399, 3
        %vm421 = vcmp.lt.s32.totalorder %v399, 4
        %v422 = vsel %vm418, %v402, %v405
        %v423 = vsel %vm421, %v411, 2102212464
        %v424 = vsel %vm420, %v408, %v423
        %v425 = vsel %vm419, %v422, %v424
        %v426 = vsel %vm418, %v405, %v408
        %v427 = vsel %vm421, %v414, 920167782
        %v428 = vsel %vm420, %v411, %v427
        %v429 = vsel %vm419, %v426, %v428
        %v430 = vsel %vm418, %v408, %v411
        %v431 = vsel %vm421, %v417, 1326507024
        %v432 = vsel %vm420, %v414, %v431
        %v433 = vsel %vm419, %v430, %v432
        %v434 = vshll.u32 %v394, 8
        %v435 = vmul.u32.u64.compose %v434, %v433
        %v436 = vextract.low.u32 %v435
        %v437 = vextract.high.u32 %v435
        %v438 = vmul.u32.u64.compose %v434, %v429
        %v439 = vextract.low.u32 %v438
        %v440 = vextract.high.u32 %v438
        %v441 = vmul.u32 %v434, %v425
        %v442 = vadd.s32 %v437, %v439
        %vm443 = vc.u32 %v437, %v439
        %v444 = vadd.s32 %v440, 1
        %v445 = vsel %vm443, %v444, %v440
        %v446 = vadd.s32 %v441, %v445
        %v447 = vadd.s32 %v446, 536870912
        %v448 = vshrl.u32 %v447, 30
        %v449 = vshll.u32 %v448, 30
        %v450 = vsub.s32 %v446, %v449
        %vm451 = vcmp.lt.s32.totalorder %v450, 0
        %v452 = vsub.s32 0, %v450
        %v453 = vsel %vm451, %v452, %v450
        %v454 = vclz %v453
        %v455 = vsub.s32 %v454, 2
        %vm456 = vcmp.gt.s32.totalorder 0, %v455
        %v457 = vsel %vm456, 0, %v455
        %v458 = vsub.s32 32, %v457
        %v459 = vshll.u32 %v450, %v457
        %v460 = vshrl.u32 %v442, %v458
        %v461 = vor.u32 %v459, %v460
        %v462 = vsub.s32 4294967266, %v457
        %v463 = vadd.s32 %v462, 127
        %v464 = vshll.u32 %v463, 23
        %v465 = vor.u32 4788187, %v464
        %v466 = vand.u32 2147483647, %v465
        %v468 = vcvt.s32.f32 %v461
        %v469 = vmul.f32 %v468, %v466
        %v470 = vxor.u32 %v469, 2147483648
        %v471 = vsel %vm388, %v470, %v469
        %v472 = vsub.s32 4, %v448
        %v473 = vsel %vm388, %v472, %v448
        %v474 = vsel %vm387, %v176, %v471
        %v475 = vsel %vm387, 0, %v473
        %v476 = vcosq.f32.pop %v474
        %v477 = vsinq.f32.pop %v474
        %vm478 = vweird.f32 %v176
        %v479 = vadd.s32 %v475, 3
        %v480 = vand.u32 %v479, 3
        %vm481 = vcmp.lt.s32.totalorder %v480, 2
        %vm482 = vcmp.eq.s32.totalorder %v480, 0
        %v483 = vxor.u32 %v477, 2147483648
        %v484 = vsel %vm482, %v476, %v483
        %vm485 = vcmp.eq.s32.totalorder %v480, 2
        %v486 = vxor.u32 %v476, 2147483648
        %v487 = vsel %vm485, %v486, %v477
        %v488 = vsel %vm481, %v484, %v487
        %v489 = vsel %vm478, nan, %v488
        %v490 = vand.u32 2147483647, %v177
        %vm491 = vcmp.le.f32.partialorder %v490, 0.7853982
        %vm492 = vcmp.lt.s32.totalorder %v177, 0
        %v493 = vand.u32 %v177, 2139095040
        %v494 = vshrl.u32 %v493, 23
        %v495 = vsub.s32 %v494, 127
        %v496 = vand.u32 2147483647, %v177
        %v497 = vand.u32 %v496, 8388607
        %v498 = vor.u32 %v497, 8388608
        %v499 = vsub.s32 0, %v498
        %v500 = vadd.s32 %v495, 1
        %vm501 = vcmp.gt.s32.totalorder %v500, 0
        %v502 = vsel %vm501, %v500, 0
        %v503 = vshrl.u32 %v502, 5
        %v504 = vand.u32 %v502, 31
        %v505 = vsub.s32 32, %v504
        %v506 = vshrl.u32 683565275, %v505
        %v507 = vshll.u32 683565275, %v504
        %v508 = vshrl.u32 2475754826, %v505
        %v509 = vor.u32 %v507, %v508
        %v510 = vshll.u32 2475754826, %v504
        %v511 = vshrl.u32 2131351028, %v505
        %v512 = vor.u32 %v510, %v511
        %v513 = vshll.u32 2131351028, %v504
        %v514 = vshrl.u32 2102212464, %v505
        %v515 = vor.u32 %v513, %v514
        %v516 = vshll.u32 2102212464, %v504
        %v517 = vshrl.u32 920167782, %v505
        %v518 = vor.u32 %v516, %v517
        %v519 = vshll.u32 920167782, %v504
        %v520 = vshrl.u32 1326507024, %v505
        %v521 = vor.u32 %v519, %v520
        %vm522 = vcmp.lt.s32.totalorder %v503, 1
        %vm523 = vcmp.lt.s32.totalorder %v503, 2
        %vm524 = vcmp.lt.s32.totalorder %v503, 3
        %vm525 = vcmp.lt.s32.totalorder %v503, 4
        %v526 = vsel %vm522, %v506, %v509
        %v527 = vsel %vm525, %v515, 2102212464
        %v528 = vsel %vm524, %v512, %v527
        %v529 = vsel %vm523, %v526, %v528
        %v530 = vsel %vm522, %v509, %v512
        %v531 = vsel %vm525, %v518, 920167782
        %v532 = vsel %vm524, %v515, %v531
        %v533 = vsel %vm523, %v530, %v532
        %v534 = vsel %vm522, %v512, %v515
        %v535 = vsel %vm525, %v521, 1326507024
        %v536 = vsel %vm524, %v518, %v535
        %v537 = vsel %vm523, %v534, %v536
        %v538 = vshll.u32 %v498, 8
        %v539 = vmul.u32.u64.compose %v538, %v537
        %v540 = vextract.low.u32 %v539
        %v541 = vextract.high.u32 %v539
        %v542 = vmul.u32.u64.compose %v538, %v533
        %v543 = vextract.low.u32 %v542
        %v544 = vextract.high.u32 %v542
        %v545 = vmul.u32 %v538, %v529
        %v546 = vadd.s32 %v541, %v543
        %vm547 = vc.u32 %v541, %v543
        %v548 = vadd.s32 %v544, 1
        %v549 = vsel %vm547, %v548, %v544
        %v550 = vadd.s32 %v545, %v549
        %v551 = vadd.s32 %v550, 536870912
        %v552 = vshrl.u32 %v551, 30
        %v553 = vshll.u32 %v552, 30
        %v554 = vsub.s32 %v550, %v553
        %vm555 = vcmp.lt.s32.totalorder %v554, 0
        %v556 = vsub.s32 0, %v554
        %v557 = vsel %vm555, %v556, %v554
        %v558 = vclz %v557
        %v559 = vsub.s32 %v558, 2
        %vm560 = vcmp.gt.s32.totalorder 0, %v559
        %v561 = vsel %vm560, 0, %v559
        %v562 = vsub.s32 32, %v561
        %v563 = vshll.u32 %v554, %v561
        %v564 = vshrl.u32 %v546, %v562
        %v565 = vor.u32 %v563, %v564
        %v566 = vsub.s32 4294967266, %v561
        %v567 = vadd.s32 %v566, 127
        %v568 = vshll.u32 %v567, 23
        %v569 = vor.u32 4788187, %v568
        %v570 = vand.u32 2147483647, %v569
        %v572 = vcvt.s32.f32 %v565
        %v573 = vmul.f32 %v572, %v570
        %v574 = vxor.u32 %v573, 2147483648
        %v575 = vsel %vm492, %v574, %v573
        %v576 = vsub.s32 4, %v552
        %v577 = vsel %vm492, %v576, %v552
        %v578 = vsel %vm491, %v177, %v575
        %v579 = vsel %vm491, 0, %v577
        %v580 = vcosq.f32.pop %v578
        %v581 = vsinq.f32.pop %v578
        %vm582 = vweird.f32 %v177
        %v583 = vadd.s32 %v579, 3
        %v584 = vand.u32 %v583, 3
        %vm585 = vcmp.lt.s32.totalorder %v584, 2
        %vm586 = vcmp.eq.s32.totalorder %v584, 0
        %v587 = vxor.u32 %v581, 2147483648
        %v588 = vsel %vm586, %v580, %v587
        %vm589 = vcmp.eq.s32.totalorder %v584, 2
        %v590 = vxor.u32 %v580, 2147483648
        %v591 = vsel %vm589, %v590, %v581
        %v592 = vsel %vm585, %v588, %v591
        %v593 = vsel %vm582, nan, %v592
        %594 = vst [vmem:[%s131] sm:$0x3f] %v281
        %595 = vst [vmem:[%s131 + $0x8] sm:$0x3f] %v385
        %596 = vst [vmem:[%s131 + $0x10] sm:$0x3f] %v489
        %597 = vst [vmem:[%s131 + $0x18] sm:$0x3f] %v593
        %v598 = vand.u32 2147483647, %v174
        %vm599 = vcmp.le.f32.partialorder %v598, 0.7853982
        %vm600 = vcmp.lt.s32.totalorder %v174, 0
        %v601 = vand.u32 %v174, 2139095040
        %v602 = vshrl.u32 %v601, 23
        %v603 = vsub.s32 %v602, 127
        %v604 = vand.u32 2147483647, %v174
        %v605 = vand.u32 %v604, 8388607
        %v606 = vor.u32 %v605, 8388608
        %v607 = vsub.s32 0, %v606
        %v608 = vadd.s32 %v603, 1
        %vm609 = vcmp.gt.s32.totalorder %v608, 0
        %v610 = vsel %vm609, %v608, 0
        %v611 = vshrl.u32 %v610, 5
        %v612 = vand.u32 %v610, 31
        %v613 = vsub.s32 32, %v612
        %v614 = vshrl.u32 683565275, %v613
        %v615 = vshll.u32 683565275, %v612
        %v616 = vshrl.u32 2475754826, %v613
        %v617 = vor.u32 %v615, %v616
        %v618 = vshll.u32 2475754826, %v612
        %v619 = vshrl.u32 2131351028, %v613
        %v620 = vor.u32 %v618, %v619
        %v621 = vshll.u32 2131351028, %v612
        %v622 = vshrl.u32 2102212464, %v613
        %v623 = vor.u32 %v621, %v622
        %v624 = vshll.u32 2102212464, %v612
        %v625 = vshrl.u32 920167782, %v613
        %v626 = vor.u32 %v624, %v625
        %v627 = vshll.u32 920167782, %v612
        %v628 = vshrl.u32 1326507024, %v613
        %v629 = vor.u32 %v627, %v628
        %vm630 = vcmp.lt.s32.totalorder %v611, 1
        %vm631 = vcmp.lt.s32.totalorder %v611, 2
        %vm632 = vcmp.lt.s32.totalorder %v611, 3
        %vm633 = vcmp.lt.s32.totalorder %v611, 4
        %v634 = vsel %vm630, %v614, %v617
        %v635 = vsel %vm633, %v623, 2102212464
        %v636 = vsel %vm632, %v620, %v635
        %v637 = vsel %vm631, %v634, %v636
        %v638 = vsel %vm630, %v617, %v620
        %v639 = vsel %vm633, %v626, 920167782
        %v640 = vsel %vm632, %v623, %v639
        %v641 = vsel %vm631, %v638, %v640
        %v642 = vsel %vm630, %v620, %v623
        %v643 = vsel %vm633, %v629, 1326507024
        %v644 = vsel %vm632, %v626, %v643
        %v645 = vsel %vm631, %v642, %v644
        %v646 = vshll.u32 %v606, 8
        %v647 = vmul.u32.u64.compose %v646, %v645
        %v648 = vextract.low.u32 %v647
        %v649 = vextract.high.u32 %v647
        %v650 = vmul.u32.u64.compose %v646, %v641
        %v651 = vextract.low.u32 %v650
        %v652 = vextract.high.u32 %v650
        %v653 = vmul.u32 %v646, %v637
        %v654 = vadd.s32 %v649, %v651
        %vm655 = vc.u32 %v649, %v651
        %v656 = vadd.s32 %v652, 1
        %v657 = vsel %vm655, %v656, %v652
        %v658 = vadd.s32 %v653, %v657
        %v659 = vadd.s32 %v658, 536870912
        %v660 = vshrl.u32 %v659, 30
        %v661 = vshll.u32 %v660, 30
        %v662 = vsub.s32 %v658, %v661
        %vm663 = vcmp.lt.s32.totalorder %v662, 0
        %v664 = vsub.s32 0, %v662
        %v665 = vsel %vm663, %v664, %v662
        %v666 = vclz %v665
        %v667 = vsub.s32 %v666, 2
        %vm668 = vcmp.gt.s32.totalorder 0, %v667
        %v669 = vsel %vm668, 0, %v667
        %v670 = vsub.s32 32, %v669
        %v671 = vshll.u32 %v662, %v669
        %v672 = vshrl.u32 %v654, %v670
        %v673 = vor.u32 %v671, %v672
        %v674 = vsub.s32 4294967266, %v669
        %v675 = vadd.s32 %v674, 127
        %v676 = vshll.u32 %v675, 23
        %v677 = vor.u32 4788187, %v676
        %v678 = vand.u32 2147483647, %v677
        %v680 = vcvt.s32.f32 %v673
        %v681 = vmul.f32 %v680, %v678
        %v682 = vxor.u32 %v681, 2147483648
        %v683 = vsel %vm600, %v682, %v681
        %v684 = vsub.s32 4, %v660
        %v685 = vsel %vm600, %v684, %v660
        %v686 = vsel %vm599, %v174, %v683
        %v687 = vsel %vm599, 0, %v685
        %v688 = vcosq.f32.pop %v686
        %v689 = vsinq.f32.pop %v686
        %vm690 = vweird.f32 %v174
        %v691 = vand.u32 %v687, 3
        %vm692 = vcmp.lt.s32.totalorder %v691, 2
        %vm693 = vcmp.eq.s32.totalorder %v691, 0
        %v694 = vxor.u32 %v689, 2147483648
        %v695 = vsel %vm693, %v688, %v694
        %vm696 = vcmp.eq.s32.totalorder %v691, 2
        %v697 = vxor.u32 %v688, 2147483648
        %v698 = vsel %vm696, %v697, %v689
        %v699 = vsel %vm692, %v695, %v698
        %v700 = vsel %vm690, nan, %v699
        %v701 = vand.u32 2147483647, %v175
        %vm702 = vcmp.le.f32.partialorder %v701, 0.7853982
        %vm703 = vcmp.lt.s32.totalorder %v175, 0
        %v704 = vand.u32 %v175, 2139095040
        %v705 = vshrl.u32 %v704, 23
        %v706 = vsub.s32 %v705, 127
        %v707 = vand.u32 2147483647, %v175
        %v708 = vand.u32 %v707, 8388607
        %v709 = vor.u32 %v708, 8388608
        %v710 = vsub.s32 0, %v709
        %v711 = vadd.s32 %v706, 1
        %vm712 = vcmp.gt.s32.totalorder %v711, 0
        %v713 = vsel %vm712, %v711, 0
        %v714 = vshrl.u32 %v713, 5
        %v715 = vand.u32 %v713, 31
        %v716 = vsub.s32 32, %v715
        %v717 = vshrl.u32 683565275, %v716
        %v718 = vshll.u32 683565275, %v715
        %v719 = vshrl.u32 2475754826, %v716
        %v720 = vor.u32 %v718, %v719
        %v721 = vshll.u32 2475754826, %v715
        %v722 = vshrl.u32 2131351028, %v716
        %v723 = vor.u32 %v721, %v722
        %v724 = vshll.u32 2131351028, %v715
        %v725 = vshrl.u32 2102212464, %v716
        %v726 = vor.u32 %v724, %v725
        %v727 = vshll.u32 2102212464, %v715
        %v728 = vshrl.u32 920167782, %v716
        %v729 = vor.u32 %v727, %v728
        %v730 = vshll.u32 920167782, %v715
        %v731 = vshrl.u32 1326507024, %v716
        %v732 = vor.u32 %v730, %v731
        %vm733 = vcmp.lt.s32.totalorder %v714, 1
        %vm734 = vcmp.lt.s32.totalorder %v714, 2
        %vm735 = vcmp.lt.s32.totalorder %v714, 3
        %vm736 = vcmp.lt.s32.totalorder %v714, 4
        %v737 = vsel %vm733, %v717, %v720
        %v738 = vsel %vm736, %v726, 2102212464
        %v739 = vsel %vm735, %v723, %v738
        %v740 = vsel %vm734, %v737, %v739
        %v741 = vsel %vm733, %v720, %v723
        %v742 = vsel %vm736, %v729, 920167782
        %v743 = vsel %vm735, %v726, %v742
        %v744 = vsel %vm734, %v741, %v743
        %v745 = vsel %vm733, %v723, %v726
        %v746 = vsel %vm736, %v732, 1326507024
        %v747 = vsel %vm735, %v729, %v746
        %v748 = vsel %vm734, %v745, %v747
        %v749 = vshll.u32 %v709, 8
        %v750 = vmul.u32.u64.compose %v749, %v748
        %v751 = vextract.low.u32 %v750
        %v752 = vextract.high.u32 %v750
        %v753 = vmul.u32.u64.compose %v749, %v744
        %v754 = vextract.low.u32 %v753
        %v755 = vextract.high.u32 %v753
        %v756 = vmul.u32 %v749, %v740
        %v757 = vadd.s32 %v752, %v754
        %vm758 = vc.u32 %v752, %v754
        %v759 = vadd.s32 %v755, 1
        %v760 = vsel %vm758, %v759, %v755
        %v761 = vadd.s32 %v756, %v760
        %v762 = vadd.s32 %v761, 536870912
        %v763 = vshrl.u32 %v762, 30
        %v764 = vshll.u32 %v763, 30
        %v765 = vsub.s32 %v761, %v764
        %vm766 = vcmp.lt.s32.totalorder %v765, 0
        %v767 = vsub.s32 0, %v765
        %v768 = vsel %vm766, %v767, %v765
        %v769 = vclz %v768
        %v770 = vsub.s32 %v769, 2
        %vm771 = vcmp.gt.s32.totalorder 0, %v770
        %v772 = vsel %vm771, 0, %v770
        %v773 = vsub.s32 32, %v772
        %v774 = vshll.u32 %v765, %v772
        %v775 = vshrl.u32 %v757, %v773
        %v776 = vor.u32 %v774, %v775
        %v777 = vsub.s32 4294967266, %v772
        %v778 = vadd.s32 %v777, 127
        %v779 = vshll.u32 %v778, 23
        %v780 = vor.u32 4788187, %v779
        %v781 = vand.u32 2147483647, %v780
        %v783 = vcvt.s32.f32 %v776
        %v784 = vmul.f32 %v783, %v781
        %v785 = vxor.u32 %v784, 2147483648
        %v786 = vsel %vm703, %v785, %v784
        %v787 = vsub.s32 4, %v763
        %v788 = vsel %vm703, %v787, %v763
        %v789 = vsel %vm702, %v175, %v786
        %v790 = vsel %vm702, 0, %v788
        %v791 = vcosq.f32.pop %v789
        %v792 = vsinq.f32.pop %v789
        %vm793 = vweird.f32 %v175
        %v794 = vand.u32 %v790, 3
        %vm795 = vcmp.lt.s32.totalorder %v794, 2
        %vm796 = vcmp.eq.s32.totalorder %v794, 0
        %v797 = vxor.u32 %v792, 2147483648
        %v798 = vsel %vm796, %v791, %v797
        %vm799 = vcmp.eq.s32.totalorder %v794, 2
        %v800 = vxor.u32 %v791, 2147483648
        %v801 = vsel %vm799, %v800, %v792
        %v802 = vsel %vm795, %v798, %v801
        %v803 = vsel %vm793, nan, %v802
        %v804 = vand.u32 2147483647, %v176
        %vm805 = vcmp.le.f32.partialorder %v804, 0.7853982
        %vm806 = vcmp.lt.s32.totalorder %v176, 0
        %v807 = vand.u32 %v176, 2139095040
        %v808 = vshrl.u32 %v807, 23
        %v809 = vsub.s32 %v808, 127
        %v810 = vand.u32 2147483647, %v176
        %v811 = vand.u32 %v810, 8388607
        %v812 = vor.u32 %v811, 8388608
        %v813 = vsub.s32 0, %v812
        %v814 = vadd.s32 %v809, 1
        %vm815 = vcmp.gt.s32.totalorder %v814, 0
        %v816 = vsel %vm815, %v814, 0
        %v817 = vshrl.u32 %v816, 5
        %v818 = vand.u32 %v816, 31
        %v819 = vsub.s32 32, %v818
        %v820 = vshrl.u32 683565275, %v819
        %v821 = vshll.u32 683565275, %v818
        %v822 = vshrl.u32 2475754826, %v819
        %v823 = vor.u32 %v821, %v822
        %v824 = vshll.u32 2475754826, %v818
        %v825 = vshrl.u32 2131351028, %v819
        %v826 = vor.u32 %v824, %v825
        %v827 = vshll.u32 2131351028, %v818
        %v828 = vshrl.u32 2102212464, %v819
        %v829 = vor.u32 %v827, %v828
        %v830 = vshll.u32 2102212464, %v818
        %v831 = vshrl.u32 920167782, %v819
        %v832 = vor.u32 %v830, %v831
        %v833 = vshll.u32 920167782, %v818
        %v834 = vshrl.u32 1326507024, %v819
        %v835 = vor.u32 %v833, %v834
        %vm836 = vcmp.lt.s32.totalorder %v817, 1
        %vm837 = vcmp.lt.s32.totalorder %v817, 2
        %vm838 = vcmp.lt.s32.totalorder %v817, 3
        %vm839 = vcmp.lt.s32.totalorder %v817, 4
        %v840 = vsel %vm836, %v820, %v823
        %v841 = vsel %vm839, %v829, 2102212464
        %v842 = vsel %vm838, %v826, %v841
        %v843 = vsel %vm837, %v840, %v842
        %v844 = vsel %vm836, %v823, %v826
        %v845 = vsel %vm839, %v832, 920167782
        %v846 = vsel %vm838, %v829, %v845
        %v847 = vsel %vm837, %v844, %v846
        %v848 = vsel %vm836, %v826, %v829
        %v849 = vsel %vm839, %v835, 1326507024
        %v850 = vsel %vm838, %v832, %v849
        %v851 = vsel %vm837, %v848, %v850
        %v852 = vshll.u32 %v812, 8
        %v853 = vmul.u32.u64.compose %v852, %v851
        %v854 = vextract.low.u32 %v853
        %v855 = vextract.high.u32 %v853
        %v856 = vmul.u32.u64.compose %v852, %v847
        %v857 = vextract.low.u32 %v856
        %v858 = vextract.high.u32 %v856
        %v859 = vmul.u32 %v852, %v843
        %v860 = vadd.s32 %v855, %v857
        %vm861 = vc.u32 %v855, %v857
        %v862 = vadd.s32 %v858, 1
        %v863 = vsel %vm861, %v862, %v858
        %v864 = vadd.s32 %v859, %v863
        %v865 = vadd.s32 %v864, 536870912
        %v866 = vshrl.u32 %v865, 30
        %v867 = vshll.u32 %v866, 30
        %v868 = vsub.s32 %v864, %v867
        %vm869 = vcmp.lt.s32.totalorder %v868, 0
        %v870 = vsub.s32 0, %v868
        %v871 = vsel %vm869, %v870, %v868
        %v872 = vclz %v871
        %v873 = vsub.s32 %v872, 2
        %vm874 = vcmp.gt.s32.totalorder 0, %v873
        %v875 = vsel %vm874, 0, %v873
        %v876 = vsub.s32 32, %v875
        %v877 = vshll.u32 %v868, %v875
        %v878 = vshrl.u32 %v860, %v876
        %v879 = vor.u32 %v877, %v878
        %v880 = vsub.s32 4294967266, %v875
        %v881 = vadd.s32 %v880, 127
        %v882 = vshll.u32 %v881, 23
        %v883 = vor.u32 4788187, %v882
        %v884 = vand.u32 2147483647, %v883
        %v886 = vcvt.s32.f32 %v879
        %v887 = vmul.f32 %v886, %v884
        %v888 = vxor.u32 %v887, 2147483648
        %v889 = vsel %vm806, %v888, %v887
        %v890 = vsub.s32 4, %v866
        %v891 = vsel %vm806, %v890, %v866
        %v892 = vsel %vm805, %v176, %v889
        %v893 = vsel %vm805, 0, %v891
        %v894 = vcosq.f32.pop %v892
        %v895 = vsinq.f32.pop %v892
        %vm896 = vweird.f32 %v176
        %v897 = vand.u32 %v893, 3
        %vm898 = vcmp.lt.s32.totalorder %v897, 2
        %vm899 = vcmp.eq.s32.totalorder %v897, 0
        %v900 = vxor.u32 %v895, 2147483648
        %v901 = vsel %vm899, %v894, %v900
        %vm902 = vcmp.eq.s32.totalorder %v897, 2
        %v903 = vxor.u32 %v894, 2147483648
        %v904 = vsel %vm902, %v903, %v895
        %v905 = vsel %vm898, %v901, %v904
        %v906 = vsel %vm896, nan, %v905
        %v907 = vand.u32 2147483647, %v177
        %vm908 = vcmp.le.f32.partialorder %v907, 0.7853982
        %vm909 = vcmp.lt.s32.totalorder %v177, 0
        %v910 = vand.u32 %v177, 2139095040
        %v911 = vshrl.u32 %v910, 23
        %v912 = vsub.s32 %v911, 127
        %v913 = vand.u32 2147483647, %v177
        %v914 = vand.u32 %v913, 8388607
        %v915 = vor.u32 %v914, 8388608
        %v916 = vsub.s32 0, %v915
        %v917 = vadd.s32 %v912, 1
        %vm918 = vcmp.gt.s32.totalorder %v917, 0
        %v919 = vsel %vm918, %v917, 0
        %v920 = vshrl.u32 %v919, 5
        %v921 = vand.u32 %v919, 31
        %v922 = vsub.s32 32, %v921
        %v923 = vshrl.u32 683565275, %v922
        %v924 = vshll.u32 683565275, %v921
        %v925 = vshrl.u32 2475754826, %v922
        %v926 = vor.u32 %v924, %v925
        %v927 = vshll.u32 2475754826, %v921
        %v928 = vshrl.u32 2131351028, %v922
        %v929 = vor.u32 %v927, %v928
        %v930 = vshll.u32 2131351028, %v921
        %v931 = vshrl.u32 2102212464, %v922
        %v932 = vor.u32 %v930, %v931
        %v933 = vshll.u32 2102212464, %v921
        %v934 = vshrl.u32 920167782, %v922
        %v935 = vor.u32 %v933, %v934
        %v936 = vshll.u32 920167782, %v921
        %v937 = vshrl.u32 1326507024, %v922
        %v938 = vor.u32 %v936, %v937
        %vm939 = vcmp.lt.s32.totalorder %v920, 1
        %vm940 = vcmp.lt.s32.totalorder %v920, 2
        %vm941 = vcmp.lt.s32.totalorder %v920, 3
        %vm942 = vcmp.lt.s32.totalorder %v920, 4
        %v943 = vsel %vm939, %v923, %v926
        %v944 = vsel %vm942, %v932, 2102212464
        %v945 = vsel %vm941, %v929, %v944
        %v946 = vsel %vm940, %v943, %v945
        %v947 = vsel %vm939, %v926, %v929
        %v948 = vsel %vm942, %v935, 920167782
        %v949 = vsel %vm941, %v932, %v948
        %v950 = vsel %vm940, %v947, %v949
        %v951 = vsel %vm939, %v929, %v932
        %v952 = vsel %vm942, %v938, 1326507024
        %v953 = vsel %vm941, %v935, %v952
        %v954 = vsel %vm940, %v951, %v953
        %v955 = vshll.u32 %v915, 8
        %v956 = vmul.u32.u64.compose %v955, %v954
        %v957 = vextract.low.u32 %v956
        %v958 = vextract.high.u32 %v956
        %v959 = vmul.u32.u64.compose %v955, %v950
        %v960 = vextract.low.u32 %v959
        %v961 = vextract.high.u32 %v959
        %v962 = vmul.u32 %v955, %v946
        %v963 = vadd.s32 %v958, %v960
        %vm964 = vc.u32 %v958, %v960
        %v965 = vadd.s32 %v961, 1
        %v966 = vsel %vm964, %v965, %v961
        %v967 = vadd.s32 %v962, %v966
        %v968 = vadd.s32 %v967, 536870912
        %v969 = vshrl.u32 %v968, 30
        %v970 = vshll.u32 %v969, 30
        %v971 = vsub.s32 %v967, %v970
        %vm972 = vcmp.lt.s32.totalorder %v971, 0
        %v973 = vsub.s32 0, %v971
        %v974 = vsel %vm972, %v973, %v971
        %v975 = vclz %v974
        %v976 = vsub.s32 %v975, 2
        %vm977 = vcmp.gt.s32.totalorder 0, %v976
        %v978 = vsel %vm977, 0, %v976
        %v979 = vsub.s32 32, %v978
        %v980 = vshll.u32 %v971, %v978
        %v981 = vshrl.u32 %v963, %v979
        %v982 = vor.u32 %v980, %v981
        %v983 = vsub.s32 4294967266, %v978
        %v984 = vadd.s32 %v983, 127
        %v985 = vshll.u32 %v984, 23
        %v986 = vor.u32 4788187, %v985
        %v987 = vand.u32 2147483647, %v986
        %v989 = vcvt.s32.f32 %v982
        %v990 = vmul.f32 %v989, %v987
        %v991 = vxor.u32 %v990, 2147483648
        %v992 = vsel %vm909, %v991, %v990
        %v993 = vsub.s32 4, %v969
        %v994 = vsel %vm909, %v993, %v969
        %v995 = vsel %vm908, %v177, %v992
        %v996 = vsel %vm908, 0, %v994
        %v997 = vcosq.f32.pop %v995
        %v998 = vsinq.f32.pop %v995
        %vm999 = vweird.f32 %v177
        %v1000 = vand.u32 %v996, 3
        %vm1001 = vcmp.lt.s32.totalorder %v1000, 2
        %vm1002 = vcmp.eq.s32.totalorder %v1000, 0
        %v1003 = vxor.u32 %v998, 2147483648
        %v1004 = vsel %vm1002, %v997, %v1003
        %vm1005 = vcmp.eq.s32.totalorder %v1000, 2
        %v1006 = vxor.u32 %v997, 2147483648
        %v1007 = vsel %vm1005, %v1006, %v998
        %v1008 = vsel %vm1001, %v1004, %v1007
        %v1009 = vsel %vm999, nan, %v1008
        %s1010 = scalar_lea.vmem %s131, 32 [#allocation2]
        %1011 = vst [vmem:[%s1010] sm:$0x3f] %v700
        %1012 = vst [vmem:[%s1010 + $0x8] sm:$0x3f] %v803
        %1013 = vst [vmem:[%s1010 + $0x10] sm:$0x3f] %v906
        %1014 = vst [vmem:[%s1010 + $0x18] sm:$0x3f] %v1009
        %s1015 = sand.u32 %s68, 1
        %s1016 = sand.u32 %s68, 1
        %s1017 = smul.addr %s1016, 64
        %s1018 = scalar_lea.vmem [#allocation2], %s1017
        // Predicated region
        $region29: #{tpu_custom_call.1} parent=27 // pred_check
          %p1019 = pneg %p78
        $region30: #{tpu_custom_call.1} parent=27 // pred_check_branch
          %1021 = sbr.rel (%p1019) target = $region32
        $region31: #{tpu_custom_call.1} parent=27 // pred_region
          %s1022 = smul.u32 4, %s13
          %s1023 = smul.addr %s1022, 8
          %s1024 = scalar_lea.vmem %s2, %s1023
          // Predicated region
          $region33: #{tpu_custom_call.1} parent=31 // pred_check
            _
          $region34: #{tpu_custom_call.1} parent=31 // pred_check_branch
            %1026 = sbr.rel (0) target = $region36
          $region35: #{tpu_custom_call.1} parent=31 // pred_region
            // Predicated region
            $region37: #{tpu_custom_call.1} parent=35 // pred_check
              _
            $region38: #{tpu_custom_call.1} parent=35 // pred_check_branch
              %1028 = sbr.rel (0) target = $region40
            $region39: #{tpu_custom_call.1} parent=35 // pred_region
              loop: start=0, step=1, limit=1
              $region41: #{tpu_custom_call.1} parent=39 // loop_pre_header
                _
              $region42: #{tpu_custom_call.1} parent=39 // loop_header
                %s1030 = sphi 0, %s1034
                %p1031 = scmp.ge.s32.totalorder %s1030, 1
                %s1035 = sphi %s1018, %s1018
                %s1036 = sphi %s1024, %s1024
              $region43: #{tpu_custom_call.1} parent=39 // loop_header_branch
                %1033 = sbr.rel (%p1031) target = $region47
              $region44: #{tpu_custom_call.1} parent=39 // loop_body
                %v1037 = vld [vmem:[%s1035] sm:$0xff]
                %1038 = vst [vmem:[%s1036] sm:$0xff] %v1037
                %v1039 = vld [vmem:[%s1035 + $0x8] sm:$0xff]
                %1040 = vst [vmem:[%s1036 + $0x8] sm:$0xff] %v1039
                %v1041 = vld [vmem:[%s1035 + $0x10] sm:$0xff]
                %1042 = vst [vmem:[%s1036 + $0x10] sm:$0xff] %v1041
                %v1043 = vld [vmem:[%s1035 + $0x18] sm:$0xff]
                %1044 = vst [vmem:[%s1036 + $0x18] sm:$0xff] %v1043
                %v1045 = vld [vmem:[%s1035 + $0x20] sm:$0xff]
                %1046 = vst [vmem:[%s1036 + $0x40] sm:$0xff] %v1045
                %v1047 = vld [vmem:[%s1035 + $0x28] sm:$0xff]
                %1048 = vst [vmem:[%s1036 + $0x48] sm:$0xff] %v1047
                %v1049 = vld [vmem:[%s1035 + $0x30] sm:$0xff]
                %1050 = vst [vmem:[%s1036 + $0x50] sm:$0xff] %v1049
                %v1051 = vld [vmem:[%s1035 + $0x38] sm:$0xff]
                %1052 = vst [vmem:[%s1036 + $0x58] sm:$0xff] %v1051
              $region45: #{tpu_custom_call.1} parent=39 // loop_footer
                %s1034 = sadd.s32 1, %s1030
              $region46: #{tpu_custom_call.1} parent=39 // loop_footer_branch
                %1029 = sbr.rel target = $region42
              $region47: #{tpu_custom_call.1} parent=39 // loop_exit
                _
            $region40: #{tpu_custom_call.1} parent=35 // pred_fallthru
              _
            // Predicated region
            $region48: #{tpu_custom_call.1} parent=35 // pred_check
              _
            $region49: #{tpu_custom_call.1} parent=35 // pred_check_branch
              %1054 = sbr.rel target = $region51
            $region50: #{tpu_custom_call.1} parent=35 // pred_region
              _
            $region51: #{tpu_custom_call.1} parent=35 // pred_fallthru
              _
          $region36: #{tpu_custom_call.1} parent=31 // pred_fallthru
            _
          %1055 = vnop
        $region32: #{tpu_custom_call.1} parent=27 // pred_fallthru
          _
      $region28: #{tpu_custom_call.1} parent=5 // pred_fallthru
        _
      %p1056 = scmp.le.s32.totalorder 2, %s8
      // Predicated region
      $region52: #{tpu_custom_call.1} parent=5 // pred_check
        %p1057 = pneg %p1056
      $region53: #{tpu_custom_call.1} parent=5 // pred_check_branch
        %1059 = sbr.rel (%p1057) target = $region55
      $region54: #{tpu_custom_call.1} parent=5 // pred_region
        %s1060 = ssub.s32 %s8, 2
        // Predicated region
        $region56: #{tpu_custom_call.1} parent=54 // pred_check
          %p1061 = pneg %p84
        $region57: #{tpu_custom_call.1} parent=54 // pred_check_branch
          %1063 = sbr.rel (%p1061) target = $region59
        $region58: #{tpu_custom_call.1} parent=54 // pred_region
          %s1064 = sand.u32 %s69, 1
          %s1065 = sand.u32 %s69, 1
          %s1066 = smul.addr %s1065, 64
          %s1067 = scalar_lea.vmem [#allocation2], %s1066
        $region59: #{tpu_custom_call.1} parent=54 // pred_fallthru
          _
      $region55: #{tpu_custom_call.1} parent=5 // pred_fallthru
        _
    $region6: #{tpu_custom_call.1} parent=1 // loop_footer
      %s12 = sadd.s32 1, %s8
    $region7: #{tpu_custom_call.1} parent=1 // loop_footer_branch
      %7 = sbr.rel target = $region3
    $region8: #{tpu_custom_call.1} parent=1 // loop_exit
      _

</llo_original>
